<compile_context>
chip_gen: v5e
topology: v5e:2x2
jax: 0.10.0
libtpu: 0.0.40
codegen_flags: <defaults>
</compile_context>

<pallas_src>
import jax
import jax.numpy as jnp
from jax.experimental import pallas as pl
from jax.experimental.pallas import tpu as pltpu


def _round_up(v, m):
    return ((v + m - 1) // m) * m


def _vmem_limit_bytes():
    """Scoped-VMEM budget ≈ half of physical VMEM (v5e/v6e: 64 MiB, v7x: 32 MiB)."""
    cap = 64 * 1024 * 1024  # conservative default (v7x physical) if query fails
    try:
        info = pltpu.get_tpu_info()
        cap = int(getattr(info, "vmem_capacity_bytes", cap) or cap)
    except Exception:
        pass
    return min(cap // 2, 64 * 1024 * 1024)


def _choose_spatial_tile(HW, max_elems):
    """Largest 128-multiple divisor of HW that fits max_elems, else full HW."""
    if HW <= max_elems or HW % 128 != 0:
        # TODO(synk): a very large, non-128-aligned H*W would need a padded
        # copy of x to split the spatial axis; fall back to one full-HW tile.
        return HW
    best, t, limit = 128, 128, min(max_elems, HW)
    while t <= limit:
        if HW % t == 0:
            best = t
        t += 128
    return best


def _embed_kernel(x_ref, w_ref, b_ref, o_ref, acc_ref):
    # x_ref:   (TB, C, THW) bf16   — current batch/spatial tile of the input
    # w_ref:   (C, E_pad)   f32    — original weight scaled by 1/(H*W), VMEM-resident
    # b_ref:   (1, E_pad)   f32    — bias, VMEM-resident
    # o_ref:   (TB, E_pad)  f32    — output embeddings tile
    # acc_ref: (TB, C)      f32    — pooled-sum accumulator across the spatial grid axis
    j = pl.program_id(1)

    @pl.when(j == 0)
    def _():
        acc_ref[...] = jnp.zeros_like(acc_ref)

    # Spatial pooling: lane-axis reduction (XLU slot), f32 accumulate.
    acc_ref[...] += jnp.sum(x_ref[...].astype(jnp.float32), axis=-1)

    @pl.when(j == pl.num_programs(1) - 1)
    def _():
        # Tiny (TB, C) @ (C, E_pad) projection on the MXU; 1/(H*W) is already
        # folded into w_ref.
        o_ref[...] = (
            jnp.dot(acc_ref[...], w_ref[...], preferred_element_type=jnp.float32)
            + b_ref[...]
        ).astype(o_ref.dtype)


def prepare_params(weight, bias, H, W):
    """Call-invariant preprocessing — hoist out of the per-forward path.

    Folds the 1/(H*W) mean into the weight, casts to f32, pads embedding_dim
    to a multiple of 128 lanes.  weight: (C, E), bias: (E,).
    """
    C, E = weight.shape
    E_pad = _round_up(E, 128)
    w = weight.astype(jnp.float32) * (1.0 / float(H * W))
    b = bias.astype(jnp.float32)
    if E_pad != E:
        w = jnp.pad(w, ((0, 0), (0, E_pad - E)))
        b = jnp.pad(b, (0, E_pad - E))
    return w, b.reshape(1, E_pad)


def base_model_forward(x_nchw, w_prepared, b_prepared, embedding_dim, *,
                       compute_dtype=jnp.bfloat16, tb_max=256):
    """x_nchw: (B, C, H, W); w_prepared: (C, E_pad); b_prepared: (1, E_pad).

    Returns (B, embedding_dim) f32 == mean(x, axis=(H, W)) @ weight + bias.
    """
    B, C, H, W = x_nchw.shape
    HW = H * W
    E_pad = w_prepared.shape[1]

    # Contiguous no-copy reshape; the bf16 cast is the only extra pass over x
    # (fuses with the upstream producer under jit in a real pipeline).
    x = x_nchw.reshape(B, C, HW).astype(compute_dtype)

    # ---- batch tiling (B is a leading dim: no sublane constraint on x) ----
    if B <= tb_max:
        TB, B_pad = B, B                      # single tile, full-dim output block
    else:
        TB = tb_max                           # multiple of 8 (f32 output sublanes)
        B_pad = _round_up(B, TB)
        if B_pad != B:                        # pad only the ragged remainder
            x = jnp.pad(x, ((0, B_pad - B), (0, 0), (0, 0)))

    # ---- spatial tiling (reduction axis, innermost grid dim) ----
    vmem_limit = _vmem_limit_bytes()
    x_itemsize = jnp.dtype(compute_dtype).itemsize
    x_block_budget = max(vmem_limit // 4, 256 * 1024)   # per double-buffered input
    max_thw = max(128, x_block_budget // max(1, TB * C * x_itemsize))
    THW = _choose_spatial_tile(HW, max_thw)

    grid = (B_pad // TB, max(1, HW // THW))

    out = pl.pallas_call(
        _embed_kernel,
        out_shape=jax.ShapeDtypeStruct((B_pad, E_pad), jnp.float32),
        grid_spec=pltpu.PrefetchScalarGridSpec(
            num_scalar_prefetch=0,
            grid=grid,
            in_specs=[
                pl.BlockSpec((TB, C, THW), lambda i, j: (i, 0, j)),   # x tile
                pl.BlockSpec((C, E_pad), lambda i, j: (0, 0)),        # weight (resident)
                pl.BlockSpec((1, E_pad), lambda i, j: (0, 0)),        # bias (resident)
            ],
            out_specs=pl.BlockSpec((TB, E_pad), lambda i, j: (i, 0)),
            scratch_shapes=[pltpu.VMEM((TB, C), jnp.float32)],
        ),
        compiler_params=pltpu.CompilerParams(
            dimension_semantics=("parallel", "arbitrary"),
            vmem_limit_bytes=vmem_limit,
        ),
    )(x, w_prepared, b_prepared)

    return out[:B, :embedding_dim]


if __name__ == "__main__":
    # config = {'embedding_dim': 128}  (module default)
    B, C, H, W = 2, 4, 16, 16
    E = 128

    key = jax.random.PRNGKey(0)
    kx, kw, kb = jax.random.split(key, 3)
    x = jax.random.normal(kx, (B, C, H, W), dtype=jnp.float32)
    # Deterministic synthetic parameters (not loaded from a checkpoint).
    weight = jax.random.normal(kw, (C, E), dtype=jnp.float32) * (1.0 / jnp.sqrt(C))
    bias = jax.random.normal(kb, (E,), dtype=jnp.float32) * 0.01

    # Hoisted, call-invariant parameter preprocessing (done once, reused).
    w_p, b_p = prepare_params(weight, bias, H, W)

    fwd = jax.jit(lambda xi: base_model_forward(xi, w_p, b_p, E))
    out = jax.block_until_ready(fwd(x))

    # References: exact-path (same bf16 input cast) and pure-f32 semantics.
    x_bf = x.astype(jnp.bfloat16).astype(jnp.float32)
    ref_bf = jnp.mean(x_bf.reshape(B, C, -1), axis=-1) @ weight + bias
    ref_f32 = jnp.mean(x.reshape(B, C, -1), axis=-1) @ weight + bias

    assert out.shape == (B, E)
    assert jnp.allclose(out, ref_bf, atol=1e-3, rtol=1e-3)
    assert jnp.allclose(out, ref_f32, atol=5e-3, rtol=5e-3)

    print("KERNEL_OK")
</pallas_src>

<mosaic_0001>
module attributes {stable_mosaic.version = 11 : i64} {
  func.func @_embed_kernel(%arg0: i32, %arg1: i32, %arg2: memref<2x4x256xbf16, #tpu.memory_space<vmem>>, %arg3: memref<4x128xf32, #tpu.memory_space<vmem>>, %arg4: memref<1x128xf32, #tpu.memory_space<vmem>>, %arg5: memref<2x128xf32, #tpu.memory_space<vmem>>, %arg6: memref<2x4xf32, #tpu.memory_space<vmem>>) attributes {dimension_semantics = [#tpu.dimension_semantics<parallel>, #tpu.dimension_semantics<arbitrary>], iteration_bounds = array<i64: 1, 1>, scalar_prefetch = 0 : i64, scratch_operands = 1 : i64, tpu.core_type = #tpu.core_type<tc>, window_params = [{transform_indices = @transform_0, window_bounds = array<i64: 2, 4, 256>}, {pipeline_mode = #tpu.pipeline_mode<synchronous>, transform_indices = @transform_1, window_bounds = array<i64: 4, 128>}, {pipeline_mode = #tpu.pipeline_mode<synchronous>, transform_indices = @transform_2, window_bounds = array<i64: 1, 128>}, {transform_indices = @transform_3, window_bounds = array<i64: 2, 128>}]} {
    %c0_i32 = arith.constant 0 : i32
    %0 = arith.cmpi eq, %arg1, %c0_i32 : i32
    %1 = arith.extui %0 : i1 to i32
    %c0_i32_0 = arith.constant 0 : i32
    %2 = arith.cmpi ne, %1, %c0_i32_0 : i32
    scf.if %2 {
      %cst_9 = arith.constant 0.000000e+00 : f32
      %12 = vector.broadcast %cst_9 : f32 to vector<2x4xf32>
      %c0_10 = arith.constant 0 : index
      %c0_11 = arith.constant 0 : index
      %13 = vector.load %arg6[%c0_10, %c0_11] : memref<2x4xf32, #tpu.memory_space<vmem>>, vector<2x4xf32>
      tpu.vector_store %arg6[%c0_10, %c0_11], %12 {strides = array<i32>} : memref<2x4xf32, #tpu.memory_space<vmem>>, vector<2x4xf32>,
    } else {
    }
    %c0 = arith.constant 0 : index
    %c0_1 = arith.constant 0 : index
    %3 = vector.load %arg6[%c0, %c0_1] : memref<2x4xf32, #tpu.memory_space<vmem>>, vector<2x4xf32>
    %c0_2 = arith.constant 0 : index
    %c0_3 = arith.constant 0 : index
    %c0_4 = arith.constant 0 : index
    %4 = vector.load %arg2[%c0_2, %c0_3, %c0_4] : memref<2x4x256xbf16, #tpu.memory_space<vmem>>, vector<2x4x256xbf16>
    %5 = arith.extf %4 : vector<2x4x256xbf16> to vector<2x4x256xf32>
    %cst = arith.constant dense<0.000000e+00> : vector<2x4xf32>
    %6 = vector.multi_reduction <add>, %5, %cst [2] : vector<2x4x256xf32> to vector<2x4xf32>
    %7 = arith.addf %3, %6 : vector<2x4xf32>
    %c0_5 = arith.constant 0 : index
    %c0_6 = arith.constant 0 : index
    %8 = vector.load %arg6[%c0_5, %c0_6] : memref<2x4xf32, #tpu.memory_space<vmem>>, vector<2x4xf32>
    tpu.vector_store %arg6[%c0_5, %c0_6], %7 {strides = array<i32>} : memref<2x4xf32, #tpu.memory_space<vmem>>, vector<2x4xf32>,
    %c0_i32_7 = arith.constant 0 : i32
    %9 = arith.cmpi eq, %arg1, %c0_i32_7 : i32
    %10 = arith.extui %9 : i1 to i32
    %c0_i32_8 = arith.constant 0 : i32
    %11 = arith.cmpi ne, %10, %c0_i32_8 : i32
    scf.if %11 {
      %c0_9 = arith.constant 0 : index
      %c0_10 = arith.constant 0 : index
      %12 = vector.load %arg6[%c0_9, %c0_10] : memref<2x4xf32, #tpu.memory_space<vmem>>, vector<2x4xf32>
      %c0_11 = arith.constant 0 : index
      %c0_12 = arith.constant 0 : index
      %13 = vector.load %arg3[%c0_11, %c0_12] : memref<4x128xf32, #tpu.memory_space<vmem>>, vector<4x128xf32>
      %cst_13 = arith.constant dense<0.000000e+00> : vector<2x128xf32>
      %14 = tpu.matmul %12, %13, %cst_13 {dimension_numbers = #tpu.dot_dimension_numbers<[1], [0], [0], [1], [0, 0, 1, 1], [], []>} : vector<2x4xf32>, vector<4x128xf32>, vector<2x128xf32> -> vector<2x128xf32>
      %c0_14 = arith.constant 0 : index
      %c0_15 = arith.constant 0 : index
      %15 = vector.load %arg4[%c0_14, %c0_15] : memref<1x128xf32, #tpu.memory_space<vmem>>, vector<1x128xf32>
      %16 = vector.broadcast %15 : vector<1x128xf32> to vector<2x128xf32>
      %17 = arith.addf %14, %16 : vector<2x128xf32>
      %c0_16 = arith.constant 0 : index
      %c0_17 = arith.constant 0 : index
      %18 = vector.load %arg5[%c0_16, %c0_17] : memref<2x128xf32, #tpu.memory_space<vmem>>, vector<2x128xf32>
      tpu.vector_store %arg5[%c0_16, %c0_17], %17 {strides = array<i32>} : memref<2x128xf32, #tpu.memory_space<vmem>>, vector<2x128xf32>,
    } else {
    }
    return
  }
  func.func @transform_0(%arg0: i32, %arg1: i32) -> (i32, i32, i32) {
    %c0_i32 = arith.constant 0 : i32
    %c0_i32_0 = arith.constant 0 : i32
    return %arg0, %c0_i32, %arg1 : i32, i32, i32
  }
  func.func @transform_1(%arg0: i32, %arg1: i32) -> (i32, i32) {
    %c0_i32 = arith.constant 0 : i32
    %c0_i32_0 = arith.constant 0 : i32
    %c0_i32_1 = arith.constant 0 : i32
    return %c0_i32, %c0_i32_0 : i32, i32
  }
  func.func @transform_2(%arg0: i32, %arg1: i32) -> (i32, i32) {
    %c0_i32 = arith.constant 0 : i32
    %c0_i32_0 = arith.constant 0 : i32
    %c0_i32_1 = arith.constant 0 : i32
    return %c0_i32, %c0_i32_0 : i32, i32
  }
  func.func @transform_3(%arg0: i32, %arg1: i32) -> (i32, i32) {
    %c0_i32 = arith.constant 0 : i32
    %c0_i32_0 = arith.constant 0 : i32
    return %arg0, %c0_i32 : i32, i32
  }
}

</mosaic_0001>

<llo_original>
// kernel: _lambda_.1
$region0: #{_lambda_.1}
  #allocation0 [shape = 'u32[]', space=smem, size = 0x4, offset = 0x4, fixed_abs, tag = 'smem constant byte address 0x4 - core index']
  #allocation1 [shape = 'u32[72,128]{1,0:T(1,128)}', space=vmem, size = 0x9000, scoped, tag = 'internal scratch']
  #allocation2 [shape = 'f32[2,4]{1,0:T(2,128)}', space=vmem, size = 0x400, scoped, tag = 'scratch operand']
  %s0 = inlined_call_operand.vmem [shape: bf16[2,4,256], index: 0, kind: input, shape index: {}]
  %s1 = inlined_call_operand.vmem [shape: f32[4,128], index: 1, kind: input, shape index: {}]
  %s2 = inlined_call_operand.vmem [shape: f32[1,128], index: 2, kind: input, shape index: {}]
  %s3 = inlined_call_operand.hbm [shape: f32[2,128], index: 3, kind: output, shape index: {}]
  %s4 = sld [smem:[#allocation0]]
  $region30: #{_lambda_.1} parent=0
    _
  %s6 = ssub.s32 1, %s4
  %s7 = scalar_select 0, %s6, %s4
  $region1: #{_lambda_.1} parent=0
    #allocation3 [shape = 'u8[1024]{0}', space=vmem, size = 0x400, scoped, tag = 'output window, operand 0, single buffered']
    #allocation4 [shape = 's32[1]{0}', space=sflag, size = 0x4, scoped, tag = 'scoped memory for _lambda_.1']
    %8 = vsyncpa [#allocation4], 0
    // Predicated region
    $region2: #{_lambda_.1} parent=1 // pred_check
      _
    $region3: #{_lambda_.1} parent=1 // pred_check_branch
      %10 = sbr.rel (0) target = $region5
    $region4: #{_lambda_.1} parent=1 // pred_region
      _
    $region5: #{_lambda_.1} parent=1 // pred_fallthru
      _
    // Predicated region
    $region6: #{_lambda_.1} parent=1 // pred_check
      _
    $region7: #{_lambda_.1} parent=1 // pred_check_branch
      %12 = sbr.rel (0) target = $region9
    $region8: #{_lambda_.1} parent=1 // pred_region
      _
    $region9: #{_lambda_.1} parent=1 // pred_fallthru
      _
    // Predicated region
    $region10: #{_lambda_.1} parent=1 // pred_check
      _
    $region11: #{_lambda_.1} parent=1 // pred_check_branch
      %14 = sbr.rel (0) target = $region13
    $region12: #{_lambda_.1} parent=1 // pred_region
      _
    $region13: #{_lambda_.1} parent=1 // pred_fallthru
      _
    %p15 = scmp.eq.s32.totalorder 0, 0
    // Predicated region
    $region14: #{_lambda_.1} parent=1 // pred_check
      %p16 = pneg %p15
    $region15: #{_lambda_.1} parent=1 // pred_check_branch
      %18 = sbr.rel (%p16) target = $region17
    $region16: #{_lambda_.1} parent=1 // pred_region
      %vm19 = vcmask 25600
      %20 = vst.msk [vmem:[#allocation2] sm:$0x3] %vm19, 0.0
    $region17: #{_lambda_.1} parent=1 // pred_fallthru
      _
    %v21 = vld [vmem:[#allocation2] sm:$0x3]
    %v22 = vld [vmem:[%s0] sm:$0xf]
    %v23 = vld [vmem:[%s0 + $0x4] sm:$0xf]
    %v24 = vunpack.c.l.bf16 %v22
    %v25 = vunpack.c.l.bf16 %v23
    %28 = vst [vmem:[#allocation1] ss:$2 sm:$0xff] %v24
    %v29 = vld.sshfl [vmem:[#allocation1] sm:$0xff pattern:$0x75316420]
    %v30 = vld.sshfl [vmem:[#allocation1 + $0x8] sm:$0xff pattern:$0x75316420]
    %s31 = scalar_lea.vmem [#allocation1], 16
    %32 = vst [vmem:[%s31] ss:$2 sm:$0xff] %v25
    %v33 = vld.sshfl [vmem:[#allocation1 + $0x10] sm:$0xff pattern:$0x75316420]
    %v34 = vld.sshfl [vmem:[#allocation1 + $0x18] sm:$0xff pattern:$0x75316420]
    %vm39 = vcmask 1043456
    %v40 = vsel %vm39, %v29, 0.0
    %v41 = vsel %vm39, %v30, 0.0
    %v42 = vadd.f32 %v40, %v41
    %43 = vadd.xlane.f32.xlu0 %v42
    %v44 = vpop.xlane.xlu0 %43
    %v45 = vsel %vm39, %v33, 0.0
    %v46 = vsel %vm39, %v34, 0.0
    %v47 = vadd.f32 %v45, %v46
    %48 = vadd.xlane.f32.xlu0 %v47
    %v49 = vpop.xlane.xlu0 %48
    %v52 = vlaneseq
    %v53 = vand.u32 %v52, 127
    %v54 = vperm.slane %v44, %v53
    %v55 = vperm.slane %v49, %v53
    %vm56 = vcmask 1041409
    %v57 = vsel %vm56, %v55, %v54
    %v59 = vadd.f32 %v21, %v57
    %vm60 = vcmask 25600
    %61 = vst.msk [vmem:[#allocation2] sm:$0x3] %vm60, %v59
    // Predicated region
    $region18: #{_lambda_.1} parent=1 // pred_check
      %p62 = pneg %p15
    $region19: #{_lambda_.1} parent=1 // pred_check_branch
      %64 = sbr.rel (%p62) target = $region21
    $region20: #{_lambda_.1} parent=1 // pred_region
      %v65 = vld [vmem:[#allocation2] sm:$0x3]
      %v66 = vld [vmem:[%s1] sm:$0xf]
      %v67 = vld [vmem:[%s2] sm:$0x1]
      %v69 = vperm.slane %v67, 0
      %vm71 = vcmask 31744
      %v73 = vsel %vm71, %v65, 0
      %v76 = vsel %vm39, %v66, 0
      %78 = vmatpush.msra.mxu0 0.0
      %79 = vmatpush.msra.mxu0 0.0
      %80 = vmatpush.msra.mxu0 0.0
      %81 = vmatpush.msra.mxu0 0.0
      %82 = vmatpush.msra.mxu0 0.0
      %83 = vmatpush.msra.mxu0 0.0
      %84 = vmatpush.msra.mxu0 0.0
      %85 = vmatpush.msra.mxu0 0.0
      %86 = vmatpush.msra.mxu0 0.0
      %87 = vmatpush.msra.mxu0 0.0
      %88 = vmatpush.msra.mxu0 0.0
      %89 = vmatpush.msra.mxu0 0.0
      %90 = vmatpush.msra.mxu0 0.0
      %91 = vmatpush.msra.mxu0 0.0
      %92 = vmatpush.msra.mxu0 0.0
      %93 = vmatpush.msra.mxu0 %v76
      %94 = vmatmul.f32.gmra.mxu0 %v73
      %v95 = vpop.f32.mrf.mxu0
      %v96 = vadd.f32 %v69, %v95
      %97 = vdwg.mxu0
      %98 = vst [vmem:[#allocation3] sm:$0x3] %v96
    $region21: #{_lambda_.1} parent=1 // pred_fallthru
      _
    // Predicated region
    $region22: #{_lambda_.1} parent=1 // pred_check
      _
    $region23: #{_lambda_.1} parent=1 // pred_check_branch
      %100 = sbr.rel (0) target = $region25
    $region24: #{_lambda_.1} parent=1 // pred_region
      %102 = vsyncadd [#allocation4], 0
      %s104 = sshll.u32 [#allocation3], 4
      %s105 = int_to_ptr.vmem [resolvable:$true] %s104
      %s106 = sshll.u32 %s3, 4
      %s107 = int_to_ptr.hbm [resolvable:$true] %s106
      %109 = dma.vmem_to_hbm [thread:$0]  %s105, 32, %s107, [#allocation4]
    $region25: #{_lambda_.1} parent=1 // pred_fallthru
      _
    // Predicated region
    $region26: #{_lambda_.1} parent=1 // pred_check
      _
    $region27: #{_lambda_.1} parent=1 // pred_check_branch
      %111 = sbr.rel (0) target = $region29
    $region28: #{_lambda_.1} parent=1 // pred_region
      %113 = dma.done [#allocation4], 32
    $region29: #{_lambda_.1} parent=1 // pred_fallthru
      _
    %114 = vsyncpa [#allocation4], 1

</llo_original>
